<compile_context>
chip_gen: v5e
topology: v5e:2x2
jax: 0.10.0
libtpu: 0.0.40
codegen_flags: <defaults>
</compile_context>

<pallas_src>
import functools

import jax
import jax.numpy as jnp
import numpy as np
from jax.experimental import pallas as pl
from jax.experimental.pallas import tpu as pltpu

LANES = 128


# ----------------------------------------------------------------------------
# Kernel bodies (scale is bound by the wrappers below; all math in f32)
# ----------------------------------------------------------------------------
def _cfg_body(mo_ref, out_ref, *, scale):
    # mo_ref: (2, R, T) -- [0] = uncond half, [1] = cond half.  out_ref: (R, T)
    u = mo_ref[0].astype(jnp.float32)
    c = mo_ref[1].astype(jnp.float32)
    out_ref[...] = (u + (c - u) * scale).astype(out_ref.dtype)


def _cfg_masked_body(mo_ref, mask_ref, x0_ref, out_ref, *, scale, groups,
                     rows_per_group):
    # mo_ref: (2, R, T); x0_ref/out_ref: (R, T); mask_ref: (groups, T) f32.
    # Image row r belongs to mask row r // rows_per_group.
    u = mo_ref[0].astype(jnp.float32)
    c = mo_ref[1].astype(jnp.float32)
    x0 = x0_ref[...].astype(jnp.float32)
    d = u + (c - u) * scale                       # full-block, packed-vreg CFG
    if rows_per_group == 1:                       # mask already 1:1 with rows
        m = mask_ref[...]
        out_ref[...] = (x0 + m * (d - x0)).astype(out_ref.dtype)
    else:                                         # broadcast mask over channels
        for g in range(groups):                   # static, tiny (== batch size)
            lo = g * rows_per_group
            hi = lo + rows_per_group
            m = mask_ref[pl.ds(g, 1), :]          # (1, T) -> sublane broadcast
            blk = x0[lo:hi] + m * (d[lo:hi] - x0[lo:hi])
            out_ref[pl.ds(lo, rows_per_group), :] = blk.astype(out_ref.dtype)


# ----------------------------------------------------------------------------
# Tile selection for the HW (lane) axis
# ----------------------------------------------------------------------------
def _choose_tile_hw(hw, bytes_per_lane, *, target_bytes=2 << 20,
                    floor_bytes=256 << 10, min_steps=8):
    """Pick the HW tile.

    Largest 128-multiple divisor of `hw` whose total streamed bytes per grid
    step fit `target_bytes` (double-buffered VMEM stays ~2x that: safe on
    v5e/v6e scoped limits and v7x's 64 MiB physical VMEM), then shrunk toward
    >= `min_steps` grid steps (DMA pipelining + v7x megacore sharding) without
    dropping below `floor_bytes` per step, and finally split once more if the
    grid would otherwise be a single step (so both v7x cores get work).
    """
    if hw % LANES != 0:
        # TODO(synk): pad HW to a multiple of 128 instead of one full-dim block.
        return hw
    divisors = sorted(d for d in range(LANES, hw + 1, LANES) if hw % d == 0)
    fits = [d for d in divisors if d * bytes_per_lane <= target_bytes] or divisors[:1]
    tile = fits[-1]                               # largest tile within the target
    if hw // tile < min_steps:
        for d in reversed(fits):                  # shrink: largest -> smallest
            if d * bytes_per_lane < floor_bytes:
                break                             # don't shred tiny latents
            tile = d
            if hw // d >= min_steps:
                break
    if hw // tile < 2:
        smaller = [d for d in divisors if d < tile]
        if smaller:                               # v7x: >=1 step per TensorCore
            tile = smaller[-1]
    return tile


# ----------------------------------------------------------------------------
# CFG combine (+ optional masked blend) via pallas_call
# ----------------------------------------------------------------------------
def cfg_combine(model_out, cond_scale, mask=None, x0=None):
    """model_out: [2B, C, H, W], uncond half first (exactly the layout produced
    by inner_model(cat([x]*2), cat([sigma]*2), cat([uncond, cond]))).
    Returns the denoised [B, C, H, W]."""
    twoB, C, H, W = model_out.shape
    assert twoB % 2 == 0, "model output must stack the uncond and cond halves"
    B = twoB // 2
    HW = H * W
    R = B * C
    dtype = model_out.dtype
    itemsize = jnp.dtype(dtype).itemsize

    # [2B, C, H, W] -> [2, B*C, HW]: a free row-major view.  One BlockSpec
    # streams both halves, and B*C rows sit in the sublane dim (8-packed for
    # f32 when B*C % 8 == 0, e.g. B=2, C=4 SD latents).
    mo3 = model_out.reshape(2, R, HW)

    # Total streamed bytes per lane-column of one grid step (tile chooser input).
    bytes_per_lane = (2 * R + R) * itemsize                 # model_out + out
    if mask is not None:
        bytes_per_lane += R * itemsize + B * 4              # + x0 + f32 mask

    tile = _choose_tile_hw(HW, bytes_per_lane)
    grid = (HW // tile,)

    mo_spec = pl.BlockSpec((2, R, tile), lambda s: (0, 0, s))
    img_spec = pl.BlockSpec((R, tile), lambda s: (0, s))
    out_shape = jax.ShapeDtypeStruct((R, HW), dtype)
    cparams = pltpu.CompilerParams(
        # Only consequential on v7x (2 TensorCores); measured no-op on v5e/v6e.
        dimension_semantics=("parallel",))

    # Static Python float (webui) -> close over it; traced scalar -> SMEM operand.
    static_scale = None
    if isinstance(cond_scale, (int, float, np.integer, np.floating)):
        static_scale = float(cond_scale)

    if mask is None:
        body = _cfg_body
        body_kwargs = {}
        data_specs = [mo_spec]
        data_args = (mo3,)
    else:
        assert x0 is not None
        m = mask.astype(jnp.float32)              # keep soft masks exact at bf16 I/O
        if m.shape[0] == 1 and B > 1:             # batch-broadcast (cheap: 1/C of an image)
            m = jnp.broadcast_to(m, (B,) + m.shape[1:])
        mC = m.shape[1]
        if mC == 1:                               # [B,1,H,W]: broadcast over C on-chip
            m2 = m.reshape(B, HW)
            groups, rows_per_group = B, C
            mask_spec = pl.BlockSpec((B, tile), lambda s: (0, s))
        else:                                     # full [B,C,H,W] mask: rows align 1:1
            assert mC == C, "mask channel dim must be 1 or C"
            m2 = m.reshape(R, HW)
            groups, rows_per_group = R, 1
            mask_spec = pl.BlockSpec((R, tile), lambda s: (0, s))
        body = _cfg_masked_body
        body_kwargs = dict(groups=groups, rows_per_group=rows_per_group)
        data_specs = [mo_spec, mask_spec, img_spec]
        data_args = (mo3, m2, x0.reshape(R, HW))

    if static_scale is not None:
        kernel = functools.partial(body, scale=static_scale, **body_kwargs)
        in_specs = data_specs
        call_args = data_args
    else:
        def kernel(scale_ref, *refs):
            body(*refs, scale=scale_ref[0], **body_kwargs)
        in_specs = [pl.BlockSpec(memory_space=pltpu.MemorySpace.SMEM)] + data_specs
        call_args = (jnp.asarray(cond_scale, jnp.float32).reshape(1),) + data_args

    out = pl.pallas_call(
        kernel,
        out_shape=out_shape,
        grid=grid,
        in_specs=in_specs,
        out_specs=img_spec,
        compiler_params=cparams,
    )(*call_args)
    return out.reshape(B, C, H, W)


# ----------------------------------------------------------------------------
# Synthetic deterministic inner model (stand-in for the wrapped diffusion UNet)
# ----------------------------------------------------------------------------
# TODO(synk): the real inner_model is an arbitrary external denoiser (UNet);
# this tiny deterministic surrogate only lets the CFG wrapper run end to end.
def _inner_model(x_in, sigma_in, cond_in, w_cond):
    # x_in: [2B, C, H, W]  sigma_in: [2B]  cond_in: [2B, T, D]  w_cond: [D, C]
    c_skip = 1.0 / (sigma_in ** 2 + 1.0)                                 # [2B]
    bias = jnp.einsum("btd,dc->bc", cond_in, w_cond) / cond_in.shape[1]  # [2B, C]
    return x_in * c_skip[:, None, None, None] + bias[:, :, None, None]


# ----------------------------------------------------------------------------
# CFGMaskedDenoiser.forward
# ----------------------------------------------------------------------------
def cfg_masked_denoiser_forward(x, sigma, uncond, cond, cond_scale, mask, x0, xi,
                                w_cond):
    del xi  # unused by the original forward (kept for signature parity)
    x_in = jnp.concatenate([x, x], axis=0)                # torch.cat([x] * 2)
    sigma_in = jnp.concatenate([sigma, sigma], axis=0)     # torch.cat([sigma] * 2)
    cond_in = jnp.concatenate([uncond, cond], axis=0)      # torch.cat([uncond, cond])
    model_out = _inner_model(x_in, sigma_in, cond_in, w_cond)   # [2B, C, H, W]
    # The uncond/cond halves are consumed in place by the Pallas kernel (no .chunk).
    return cfg_combine(model_out, cond_scale, mask=mask, x0=x0)


# ----------------------------------------------------------------------------
# Pure-JAX reference for verification
# ----------------------------------------------------------------------------
def _reference(x, sigma, uncond, cond, cond_scale, mask, x0, w_cond):
    x_in = jnp.concatenate([x, x], axis=0)
    sigma_in = jnp.concatenate([sigma, sigma], axis=0)
    cond_in = jnp.concatenate([uncond, cond], axis=0)
    out = _inner_model(x_in, sigma_in, cond_in, w_cond)
    u, c = jnp.split(out, 2, axis=0)
    denoised = u + (c - u) * cond_scale
    if mask is not None:
        denoised = x0 * (1.0 - mask) + mask * denoised
    return denoised


if __name__ == "__main__":
    key = jax.random.PRNGKey(0)
    kx, ks, ku, kc, km, k0, kw = jax.random.split(key, 7)

    B, C, H, W = 2, 4, 16, 16      # latent image
    T, D = 8, 32                   # conditioning seq / hidden

    x = jax.random.normal(kx, (B, C, H, W), dtype=jnp.float32)
    sigma = jnp.abs(jax.random.normal(ks, (B,), dtype=jnp.float32)) + 0.5
    uncond = jax.random.normal(ku, (B, T, D), dtype=jnp.float32)
    cond = jax.random.normal(kc, (B, T, D), dtype=jnp.float32)
    mask = (jax.random.uniform(km, (B, 1, H, W)) > 0.5).astype(jnp.float32)
    x0 = jax.random.normal(k0, (B, C, H, W), dtype=jnp.float32)
    xi = jnp.zeros_like(x)         # unused by forward
    cond_scale = 7.5
    w_cond = jax.random.normal(kw, (D, C), dtype=jnp.float32) * 0.1

    # 1) masked path, static (Python float) cond_scale, jitted end to end
    fwd_static = jax.jit(cfg_masked_denoiser_forward, static_argnums=(4,))
    out_masked = jax.block_until_ready(
        fwd_static(x, sigma, uncond, cond, cond_scale, mask, x0, xi, w_cond))
    ref_masked = _reference(x, sigma, uncond, cond, cond_scale, mask, x0, w_cond)
    np.testing.assert_allclose(np.asarray(out_masked), np.asarray(ref_masked),
                               rtol=1e-5, atol=1e-5)

    # 2) no-mask path with a traced cond_scale (exercises the SMEM scalar path)
    fwd_dyn = jax.jit(cfg_masked_denoiser_forward)
    out_nomask = jax.block_until_ready(
        fwd_dyn(x, sigma, uncond, cond, jnp.asarray(cond_scale, jnp.float32),
                None, None, xi, w_cond))
    ref_nomask = _reference(x, sigma, uncond, cond, cond_scale, None, None, w_cond)
    np.testing.assert_allclose(np.asarray(out_nomask), np.asarray(ref_nomask),
                               rtol=1e-5, atol=1e-5)

    # 3) bf16 I/O path of the combine kernel itself (mask stays f32 by design)
    mo = _inner_model(jnp.concatenate([x, x], 0),
                      jnp.concatenate([sigma, sigma], 0),
                      jnp.concatenate([uncond, cond], 0), w_cond)
    mo_bf16 = mo.astype(jnp.bfloat16)
    x0_bf16 = x0.astype(jnp.bfloat16)
    out_bf16 = jax.block_until_ready(
        cfg_combine(mo_bf16, cond_scale, mask=mask, x0=x0_bf16))
    u_b, c_b = jnp.split(mo_bf16.astype(jnp.float32), 2, axis=0)
    d_ref = u_b + (c_b - u_b) * cond_scale
    d_ref = x0_bf16.astype(jnp.float32) * (1.0 - mask) + mask * d_ref
    np.testing.assert_allclose(np.asarray(out_bf16.astype(jnp.float32)),
                               np.asarray(d_ref), rtol=2e-2, atol=2e-2)

    print("KERNEL_OK")
</pallas_src>

<mosaic_0001>
module attributes {stable_mosaic.version = 11 : i64} {
  func.func @_cfg_masked_body(%arg0: i32, %arg1: memref<2x8x128xf32, #tpu.memory_space<vmem>>, %arg2: memref<2x128xf32, #tpu.memory_space<vmem>>, %arg3: memref<8x128xf32, #tpu.memory_space<vmem>>, %arg4: memref<8x128xf32, #tpu.memory_space<vmem>>) attributes {dimension_semantics = [#tpu.dimension_semantics<parallel>], iteration_bounds = array<i64: 2>, scalar_prefetch = 0 : i64, scratch_operands = 0 : i64, tpu.core_type = #tpu.core_type<tc>, window_params = [{transform_indices = @transform_0, window_bounds = array<i64: 2, 8, 128>}, {transform_indices = @transform_1, window_bounds = array<i64: 2, 128>}, {transform_indices = @transform_2, window_bounds = array<i64: 8, 128>}, {transform_indices = @transform_3, window_bounds = array<i64: 8, 128>}]} {
    %c0 = arith.constant 0 : index
    %c0_0 = arith.constant 0 : index
    %c0_1 = arith.constant 0 : index
    %0 = vector.load %arg1[%c0, %c0_0, %c0_1] : memref<2x8x128xf32, #tpu.memory_space<vmem>>, vector<1x8x128xf32>
    %1 = vector.shape_cast %0 : vector<1x8x128xf32> to vector<8x128xf32>
    %c1 = arith.constant 1 : index
    %c0_2 = arith.constant 0 : index
    %c0_3 = arith.constant 0 : index
    %2 = vector.load %arg1[%c1, %c0_2, %c0_3] : memref<2x8x128xf32, #tpu.memory_space<vmem>>, vector<1x8x128xf32>
    %3 = vector.shape_cast %2 : vector<1x8x128xf32> to vector<8x128xf32>
    %c0_4 = arith.constant 0 : index
    %c0_5 = arith.constant 0 : index
    %4 = vector.load %arg3[%c0_4, %c0_5] : memref<8x128xf32, #tpu.memory_space<vmem>>, vector<8x128xf32>
    %5 = arith.subf %3, %1 : vector<8x128xf32>
    %cst = arith.constant 7.500000e+00 : f32
    %6 = vector.broadcast %cst : f32 to vector<8x128xf32>
    %7 = arith.mulf %5, %6 : vector<8x128xf32>
    %8 = arith.addf %1, %7 : vector<8x128xf32>
    %c0_6 = arith.constant 0 : index
    %c0_7 = arith.constant 0 : index
    %9 = vector.load %arg2[%c0_6, %c0_7] : memref<2x128xf32, #tpu.memory_space<vmem>>, vector<1x128xf32>
    %10 = vector.extract_strided_slice %4 {offsets = [0, 0], sizes = [4, 128], strides = [1, 1]} : vector<8x128xf32> to vector<4x128xf32>
    %11 = vector.extract_strided_slice %8 {offsets = [0, 0], sizes = [4, 128], strides = [1, 1]} : vector<8x128xf32> to vector<4x128xf32>
    %12 = vector.extract_strided_slice %4 {offsets = [0, 0], sizes = [4, 128], strides = [1, 1]} : vector<8x128xf32> to vector<4x128xf32>
    %13 = arith.subf %11, %12 : vector<4x128xf32>
    %14 = vector.broadcast %9 : vector<1x128xf32> to vector<4x128xf32>
    %15 = arith.mulf %14, %13 : vector<4x128xf32>
    %16 = arith.addf %10, %15 : vector<4x128xf32>
    %c0_8 = arith.constant 0 : index
    %c0_9 = arith.constant 0 : index
    %17 = vector.load %arg4[%c0_8, %c0_9] : memref<8x128xf32, #tpu.memory_space<vmem>>, vector<4x128xf32>
    tpu.vector_store %arg4[%c0_8, %c0_9], %16 {strides = array<i32>} : memref<8x128xf32, #tpu.memory_space<vmem>>, vector<4x128xf32>,
    %c1_10 = arith.constant 1 : index
    %c0_11 = arith.constant 0 : index
    %18 = vector.load %arg2[%c1_10, %c0_11] : memref<2x128xf32, #tpu.memory_space<vmem>>, vector<1x128xf32>
    %19 = vector.extract_strided_slice %4 {offsets = [4, 0], sizes = [4, 128], strides = [1, 1]} : vector<8x128xf32> to vector<4x128xf32>
    %20 = vector.extract_strided_slice %8 {offsets = [4, 0], sizes = [4, 128], strides = [1, 1]} : vector<8x128xf32> to vector<4x128xf32>
    %21 = vector.extract_strided_slice %4 {offsets = [4, 0], sizes = [4, 128], strides = [1, 1]} : vector<8x128xf32> to vector<4x128xf32>
    %22 = arith.subf %20, %21 : vector<4x128xf32>
    %23 = vector.broadcast %18 : vector<1x128xf32> to vector<4x128xf32>
    %24 = arith.mulf %23, %22 : vector<4x128xf32>
    %25 = arith.addf %19, %24 : vector<4x128xf32>
    %c4 = arith.constant 4 : index
    %c0_12 = arith.constant 0 : index
    %26 = vector.load %arg4[%c4, %c0_12] : memref<8x128xf32, #tpu.memory_space<vmem>>, vector<4x128xf32>
    tpu.vector_store %arg4[%c4, %c0_12], %25 {strides = array<i32>} : memref<8x128xf32, #tpu.memory_space<vmem>>, vector<4x128xf32>,
    return
  }
  func.func @transform_0(%arg0: i32) -> (i32, i32, i32) {
    %c0_i32 = arith.constant 0 : i32
    %c0_i32_0 = arith.constant 0 : i32
    %c0_i32_1 = arith.constant 0 : i32
    return %c0_i32, %c0_i32_0, %arg0 : i32, i32, i32
  }
  func.func @transform_1(%arg0: i32) -> (i32, i32) {
    %c0_i32 = arith.constant 0 : i32
    %c0_i32_0 = arith.constant 0 : i32
    return %c0_i32, %arg0 : i32, i32
  }
  func.func @transform_2(%arg0: i32) -> (i32, i32) {
    %c0_i32 = arith.constant 0 : i32
    %c0_i32_0 = arith.constant 0 : i32
    return %c0_i32, %arg0 : i32, i32
  }
  func.func @transform_3(%arg0: i32) -> (i32, i32) {
    %c0_i32 = arith.constant 0 : i32
    %c0_i32_0 = arith.constant 0 : i32
    return %c0_i32, %arg0 : i32, i32
  }
}

</mosaic_0001>

<llo_original>
// kernel: cfg_masked_denoiser_forward.1
$region0: #{cfg_masked_denoiser_forward.1}
  #allocation0 [shape = 'u32[]', space=smem, size = 0x4, offset = 0x4, fixed_abs, tag = 'smem constant byte address 0x4 - core index']
  #allocation1 [shape = 'u32[72,128]{1,0:T(1,128)}', space=vmem, size = 0x9000, scoped, tag = 'internal scratch']
  %s0 = inlined_call_operand.vmem [shape: f32[2,8,256], index: 0, kind: input, shape index: {}]
  %s1 = inlined_call_operand.vmem [shape: f32[2,256], index: 1, kind: input, shape index: {}]
  %s2 = inlined_call_operand.vmem [shape: f32[8,256], index: 2, kind: input, shape index: {}]
  %s3 = inlined_call_operand.vmem [shape: f32[8,256], index: 3, kind: output, shape index: {}]
  %s4 = sld [smem:[#allocation0]]
  $region83: #{cfg_masked_denoiser_forward.1} parent=0
    _
  %s6 = ssub.s32 1, %s4
  %s7 = scalar_select 0, %s6, %s4
  $region1: #{cfg_masked_denoiser_forward.1} parent=0
    #allocation2 [shape = 'u8[16384]{0}', space=vmem, size = 0x4000, scoped, tag = 'input window, operand 0']
    loop: start=0, step=1, limit=4
    $region2: #{cfg_masked_denoiser_forward.1} parent=1 // loop_pre_header
      _
    $region3: #{cfg_masked_denoiser_forward.1} parent=1 // loop_header
      %s9 = sphi 0, %s13
      %p10 = scmp.ge.s32.totalorder %s9, 4
      %s19 = sphi 0, %s21
      %s22 = sphi 0, %s19
      %s23 = sphi 0, %s22
      %s39 = sphi 0, %s23
      %s45 = sphi 0, %s47
      %s48 = sphi 0, %s45
      %s49 = sphi 0, %s48
      %s65 = sphi 0, %s49
      %s71 = sphi 0, %s73
      %s74 = sphi 0, %s71
      %s75 = sphi 0, %s74
      %s91 = sphi 0, %s75
      %s97 = sphi 0, %s99
      %s100 = sphi 0, %s97
      %s101 = sphi 0, %s100
      %s117 = sphi 0, %s101
    $region4: #{cfg_masked_denoiser_forward.1} parent=1 // loop_header_branch
      %12 = sbr.rel (%p10) target = $region8
    $region5: #{cfg_masked_denoiser_forward.1} parent=1 // loop_body
      %s14 = ssub.s32 %s9, 1
      %s15 = ssub.s32 %s9, 2
      %s16 = sadd.s32 %s9, 1
      %s17 = ssub.s32 %s9, %s16
      %p18 = scmp.eq.s32.totalorder %s17, 0
      %s20 = sadd.s32 %s19, 1
      %s21 = scalar_select %p18, %s19, %s20
      %p24 = pneg %p18
      %p25 = scmp.eq.s32.totalorder %s9, 1
      %p26 = por %p24, %p25
      %p27 = scmp.ne.s32.totalorder %s19, %s22
      %p28 = scmp.eq.s32.totalorder %s9, 0
      %p29 = por %p27, %p28
      %p30 = scmp.ne.s32.totalorder %s19, %s22
      %p31 = scmp.eq.s32.totalorder %s14, 1
      %p32 = por %p30, %p31
      %p33 = scmp.ne.s32.totalorder %s22, %s23
      %p34 = scmp.eq.s32.totalorder %s14, 0
      %p35 = por %p33, %p34
      %p36 = scmp.ne.s32.totalorder %s22, %s23
      %p37 = scmp.eq.s32.totalorder %s15, 1
      %p38 = por %p36, %p37
      %p40 = scmp.ne.s32.totalorder %s23, %s39
      %p41 = scmp.eq.s32.totalorder %s15, 0
      %p42 = por %p40, %p41
      %s43 = ssub.s32 %s9, %s16
      %p44 = scmp.eq.s32.totalorder %s43, 0
      %s46 = sadd.s32 %s45, 1
      %s47 = scalar_select %p44, %s45, %s46
      %p50 = pneg %p44
      %p51 = scmp.eq.s32.totalorder %s9, 1
      %p52 = por %p50, %p51
      %p53 = scmp.ne.s32.totalorder %s45, %s48
      %p54 = scmp.eq.s32.totalorder %s9, 0
      %p55 = por %p53, %p54
      %p56 = scmp.ne.s32.totalorder %s45, %s48
      %p57 = scmp.eq.s32.totalorder %s14, 1
      %p58 = por %p56, %p57
      %p59 = scmp.ne.s32.totalorder %s48, %s49
      %p60 = scmp.eq.s32.totalorder %s14, 0
      %p61 = por %p59, %p60
      %p62 = scmp.ne.s32.totalorder %s48, %s49
      %p63 = scmp.eq.s32.totalorder %s15, 1
      %p64 = por %p62, %p63
      %p66 = scmp.ne.s32.totalorder %s49, %s65
      %p67 = scmp.eq.s32.totalorder %s15, 0
      %p68 = por %p66, %p67
      %s69 = ssub.s32 %s9, %s16
      %p70 = scmp.eq.s32.totalorder %s69, 0
      %s72 = sadd.s32 %s71, 1
      %s73 = scalar_select %p70, %s71, %s72
      %p76 = pneg %p70
      %p77 = scmp.eq.s32.totalorder %s9, 1
      %p78 = por %p76, %p77
      %p79 = scmp.ne.s32.totalorder %s71, %s74
      %p80 = scmp.eq.s32.totalorder %s9, 0
      %p81 = por %p79, %p80
      %p82 = scmp.ne.s32.totalorder %s71, %s74
      %p83 = scmp.eq.s32.totalorder %s14, 1
      %p84 = por %p82, %p83
      %p85 = scmp.ne.s32.totalorder %s74, %s75
      %p86 = scmp.eq.s32.totalorder %s14, 0
      %p87 = por %p85, %p86
      %p88 = scmp.ne.s32.totalorder %s74, %s75
      %p89 = scmp.eq.s32.totalorder %s15, 1
      %p90 = por %p88, %p89
      %p92 = scmp.ne.s32.totalorder %s75, %s91
      %p93 = scmp.eq.s32.totalorder %s15, 0
      %p94 = por %p92, %p93
      %s95 = ssub.s32 %s9, %s16
      %p96 = scmp.eq.s32.totalorder %s95, 0
      %s98 = sadd.s32 %s97, 1
      %s99 = scalar_select %p96, %s97, %s98
      %p102 = pneg %p96
      %p103 = scmp.eq.s32.totalorder %s9, 1
      %p104 = por %p102, %p103
      %p105 = scmp.ne.s32.totalorder %s97, %s100
      %p106 = scmp.eq.s32.totalorder %s9, 0
      %p107 = por %p105, %p106
      %p108 = scmp.ne.s32.totalorder %s97, %s100
      %p109 = scmp.eq.s32.totalorder %s14, 1
      %p110 = por %p108, %p109
      %p111 = scmp.ne.s32.totalorder %s100, %s101
      %p112 = scmp.eq.s32.totalorder %s14, 0
      %p113 = por %p111, %p112
      %p114 = scmp.ne.s32.totalorder %s100, %s101
      %p115 = scmp.eq.s32.totalorder %s15, 1
      %p116 = por %p114, %p115
      %p118 = scmp.ne.s32.totalorder %s101, %s117
      %p119 = scmp.eq.s32.totalorder %s15, 0
      %p120 = por %p118, %p119
      %p121 = scmp.le.s32.totalorder 1, %s9
      %p122 = scmp.lt.s32.totalorder %s9, 3
      %p123 = pnand %p121, %p122
      %p124 = pneg %p123
      // Predicated region
      $region9: #{cfg_masked_denoiser_forward.1} parent=5 // pred_check
        _
      $region10: #{cfg_masked_denoiser_forward.1} parent=5 // pred_check_branch
        %126 = sbr.rel (%p123) target = $region12
      $region11: #{cfg_masked_denoiser_forward.1} parent=5 // pred_region
        %s127 = ssub.s32 %s9, 1
      $region12: #{cfg_masked_denoiser_forward.1} parent=5 // pred_fallthru
        _
      %p128 = scmp.lt.s32.totalorder %s9, 2
      // Predicated region
      $region13: #{cfg_masked_denoiser_forward.1} parent=5 // pred_check
        %p129 = pneg %p128
      $region14: #{cfg_masked_denoiser_forward.1} parent=5 // pred_check_branch
        %131 = sbr.rel (%p129) target = $region16
      $region15: #{cfg_masked_denoiser_forward.1} parent=5 // pred_region
        // Predicated region
        $region17: #{cfg_masked_denoiser_forward.1} parent=15 // pred_check
          %p132 = pneg %p29
        $region18: #{cfg_masked_denoiser_forward.1} parent=15 // pred_check_branch
          %134 = sbr.rel (%p132) target = $region20
        $region19: #{cfg_masked_denoiser_forward.1} parent=15 // pred_region
          %s135 = sand.u32 %s19, 1
          %s136 = sand.u32 %s19, 1
          %s137 = smul.addr %s136, 16
          %s138 = scalar_lea.vmem [#allocation2], %s137
          %s139 = smul.addr %s9, 8
          %s140 = scalar_lea.vmem %s0, %s139
          // Predicated region
          $region21: #{cfg_masked_denoiser_forward.1} parent=19 // pred_check
            _
          $region22: #{cfg_masked_denoiser_forward.1} parent=19 // pred_check_branch
            %142 = sbr.rel (0) target = $region24
          $region23: #{cfg_masked_denoiser_forward.1} parent=19 // pred_region
            // Predicated region
            $region25: #{cfg_masked_denoiser_forward.1} parent=23 // pred_check
              _
            $region26: #{cfg_masked_denoiser_forward.1} parent=23 // pred_check_branch
              %144 = sbr.rel (0) target = $region28
            $region27: #{cfg_masked_denoiser_forward.1} parent=23 // pred_region
              // Predicated region
              $region40: #{cfg_masked_denoiser_forward.1} parent=27 // pred_check
                _
              $region41: #{cfg_masked_denoiser_forward.1} parent=27 // pred_check_branch
                %162 = sbr.rel (0) target = $region43
              $region42: #{cfg_masked_denoiser_forward.1} parent=27 // pred_region
                loop: start=0, step=1, limit=1
                $region44: #{cfg_masked_denoiser_forward.1} parent=42 // loop_pre_header
                  _
                $region45: #{cfg_masked_denoiser_forward.1} parent=42 // loop_header
                  %s164 = sphi 0, %s168
                  %p165 = scmp.ge.s32.totalorder %s164, 1
                  %s169 = sphi %s140, %s140
                  %s170 = sphi %s138, %s138
                $region46: #{cfg_masked_denoiser_forward.1} parent=42 // loop_header_branch
                  %167 = sbr.rel (%p165) target = $region50
                $region47: #{cfg_masked_denoiser_forward.1} parent=42 // loop_body
                  %v171 = vld [vmem:[%s169] sm:$0xff]
                  %172 = vst [vmem:[%s170] sm:$0xff] %v171
                  %v173 = vld [vmem:[%s169 + $0x10] sm:$0xff]
                  %174 = vst [vmem:[%s170 + $0x8] sm:$0xff] %v173
                $region48: #{cfg_masked_denoiser_forward.1} parent=42 // loop_footer
                  %s168 = sadd.s32 1, %s164
                $region49: #{cfg_masked_denoiser_forward.1} parent=42 // loop_footer_branch
                  %163 = sbr.rel target = $region45
                $region50: #{cfg_masked_denoiser_forward.1} parent=42 // loop_exit
                  _
              $region43: #{cfg_masked_denoiser_forward.1} parent=27 // pred_fallthru
                _
              // Predicated region
              $region51: #{cfg_masked_denoiser_forward.1} parent=27 // pred_check
                _
              $region52: #{cfg_masked_denoiser_forward.1} parent=27 // pred_check_branch
                %176 = sbr.rel target = $region54
              $region53: #{cfg_masked_denoiser_forward.1} parent=27 // pred_region
                _
              $region54: #{cfg_masked_denoiser_forward.1} parent=27 // pred_fallthru
                _
            $region28: #{cfg_masked_denoiser_forward.1} parent=23 // pred_fallthru
              _
            // Predicated region
            $region29: #{cfg_masked_denoiser_forward.1} parent=23 // pred_check
              _
            $region30: #{cfg_masked_denoiser_forward.1} parent=23 // pred_check_branch
              %146 = sbr.rel target = $region32
            $region31: #{cfg_masked_denoiser_forward.1} parent=23 // pred_region
              %s148 = ssub.s32 256, 1
              loop: start=0, step=1, limit=1
              $region33: #{cfg_masked_denoiser_forward.1} parent=31 // loop_pre_header
                _
              $region34: #{cfg_masked_denoiser_forward.1} parent=31 // loop_header
                %s150 = sphi 0, %s154
                %p151 = scmp.ge.s32.totalorder %s150, 1
                %s155 = sphi %s140, %s140
                %s156 = sphi %s138, %s138
              $region35: #{cfg_masked_denoiser_forward.1} parent=31 // loop_header_branch
                %153 = sbr.rel (%p151) target = $region39
              $region36: #{cfg_masked_denoiser_forward.1} parent=31 // loop_body
                %v157 = vld [vmem:[%s155] sm:%s148]
                %158 = vst [vmem:[%s156] sm:%s148] %v157
                %v159 = vld [vmem:[%s155 + $0x10] sm:%s148]
                %160 = vst [vmem:[%s156 + $0x8] sm:%s148] %v159
              $region37: #{cfg_masked_denoiser_forward.1} parent=31 // loop_footer
                %s154 = sadd.s32 1, %s150
              $region38: #{cfg_masked_denoiser_forward.1} parent=31 // loop_footer_branch
                %149 = sbr.rel target = $region34
              $region39: #{cfg_masked_denoiser_forward.1} parent=31 // loop_exit
                _
            $region32: #{cfg_masked_denoiser_forward.1} parent=23 // pred_fallthru
              _
          $region24: #{cfg_masked_denoiser_forward.1} parent=19 // pred_fallthru
            _
          %177 = vnop
        $region20: #{cfg_masked_denoiser_forward.1} parent=15 // pred_fallthru
          _
        // Predicated region
        $region55: #{cfg_masked_denoiser_forward.1} parent=15 // pred_check
          %p178 = pneg %p55
        $region56: #{cfg_masked_denoiser_forward.1} parent=15 // pred_check_branch
          %180 = sbr.rel (%p178) target = $region58
        $region57: #{cfg_masked_denoiser_forward.1} parent=15 // pred_region
          %p181 = scmp.lt.s32.totalorder %s9, 1
          %s182 = scalar_select %p181, %s9, 1
          %s183 = smul.addr %s182, 2
          %s184 = scalar_lea.vmem %s1, %s183
        $region58: #{cfg_masked_denoiser_forward.1} parent=15 // pred_fallthru
          _
        // Predicated region
        $region59: #{cfg_masked_denoiser_forward.1} parent=15 // pred_check
          %p185 = pneg %p81
        $region60: #{cfg_masked_denoiser_forward.1} parent=15 // pred_check_branch
          %187 = sbr.rel (%p185) target = $region62
        $region61: #{cfg_masked_denoiser_forward.1} parent=15 // pred_region
          %p188 = scmp.lt.s32.totalorder %s9, 1
          %s189 = scalar_select %p188, %s9, 1
          %s190 = smul.addr %s189, 8
          %s191 = scalar_lea.vmem %s2, %s190
        $region62: #{cfg_masked_denoiser_forward.1} parent=15 // pred_fallthru
          _
      $region16: #{cfg_masked_denoiser_forward.1} parent=5 // pred_fallthru
        _
      %p192 = scmp.le.s32.totalorder 1, %s9
      %p193 = scmp.lt.s32.totalorder %s9, 3
      %p194 = pnand %p192, %p193
      %p195 = pneg %p194
      // Predicated region
      $region63: #{cfg_masked_denoiser_forward.1} parent=5 // pred_check
        _
      $region64: #{cfg_masked_denoiser_forward.1} parent=5 // pred_check_branch
        %197 = sbr.rel (%p194) target = $region66
      $region65: #{cfg_masked_denoiser_forward.1} parent=5 // pred_region
        %s198 = ssub.s32 %s9, 1
        %s199 = sand.u32 %s22, 1
        %s200 = sand.u32 %s22, 1
        %s201 = smul.addr %s200, 16
        %s202 = scalar_lea.vmem [#allocation2], %s201
        // Predicated region
        $region67: #{cfg_masked_denoiser_forward.1} parent=65 // pred_check
          %p203 = pneg %p35
        $region68: #{cfg_masked_denoiser_forward.1} parent=65 // pred_check_branch
          %205 = sbr.rel (%p203) target = $region70
        $region69: #{cfg_masked_denoiser_forward.1} parent=65 // pred_region
          _
        $region70: #{cfg_masked_denoiser_forward.1} parent=65 // pred_fallthru
          _
        %s206 = sand.u32 %s22, 1
        %s207 = sand.u32 %s22, 1
        %s208 = smul.addr %s207, 16
        %s209 = scalar_lea.vmem [#allocation2], %s208
        %p210 = pneg %p35
        %p211 = pneg %p32
        %p212 = scmp.lt.s32.totalorder %s14, 1
        %s213 = scalar_select %p212, %s14, 1
        %s214 = smul.addr %s213, 2
        %s215 = scalar_lea.vmem %s1, %s214
        %p216 = pneg %p61
        %p217 = pneg %p58
        %p218 = scmp.lt.s32.totalorder %s14, 1
        %s219 = scalar_select %p218, %s14, 1
        %s220 = smul.addr %s219, 8
        %s221 = scalar_lea.vmem %s2, %s220
        %p222 = pneg %p87
        %p223 = pneg %p84
        %p224 = pneg %p113
        %p225 = pneg %p110
        %p226 = scmp.lt.s32.totalorder %s14, 1
        %s227 = scalar_select %p226, %s14, 1
        %s228 = smul.addr %s227, 8
        %s229 = scalar_lea.vmem %s3, %s228
        %p230 = scmp.lt.s32.totalorder %s14, 1
        %s231 = scalar_select %p230, %s14, 1
        %s232 = smul.addr %s231, 2
        %s233 = scalar_lea.vmem %s1, %s232
        %p234 = scmp.lt.s32.totalorder %s14, 1
        %s235 = scalar_select %p234, %s14, 1
        %s236 = smul.addr %s235, 8
        %s237 = scalar_lea.vmem %s2, %s236
        %p238 = scmp.lt.s32.totalorder %s14, 1
        %s239 = scalar_select %p238, %s14, 1
        %s240 = smul.addr %s239, 8
        %s241 = scalar_lea.vmem %s3, %s240
        %v242 = vld [vmem:[%s202] sm:$0xff]
        %s243 = scalar_lea.vmem %s202, 8 [#allocation2]
        %v244 = vld [vmem:[%s243] sm:$0xff]
        %v245 = vld [vmem:[%s237] sm:$0xff]
        %v246 = vsub.f32 %v244, %v242
        %v247 = vmul.f32 %v246, 7.5
        %v248 = vadd.f32 %v242, %v247
        %v249 = vld [vmem:[%s233] sm:$0x1]
        %v250 = vsub.f32 %v248, %v245
        %v251 = vperm.slane %v249, 0
        %v252 = vmul.f32 %v251, %v250
        %v253 = vadd.f32 %v245, %v252
        %254 = vst [vmem:[%s241] sm:$0xf] %v253
        %v255 = vld [vmem:[%s233 + $0x1] sm:$0x1]
        %v256 = vperm.slane %v255, 0
        %v257 = vmul.f32 %v256, %v250
        %v258 = vadd.f32 %v245, %v257
        %259 = vst [vmem:[%s241] sm:$0xf0] %v258
        %p260 = scmp.lt.s32.totalorder %s14, 1
        %s261 = scalar_select %p260, %s14, 1
        %s262 = smul.addr %s261, 8
        %s263 = scalar_lea.vmem %s3, %s262
        // Predicated region
        $region71: #{cfg_masked_denoiser_forward.1} parent=65 // pred_check
          %p264 = pneg %p110
        $region72: #{cfg_masked_denoiser_forward.1} parent=65 // pred_check_branch
          %266 = sbr.rel (%p264) target = $region74
        $region73: #{cfg_masked_denoiser_forward.1} parent=65 // pred_region
          _
        $region74: #{cfg_masked_denoiser_forward.1} parent=65 // pred_fallthru
          _
      $region66: #{cfg_masked_denoiser_forward.1} parent=5 // pred_fallthru
        _
      %p267 = scmp.le.s32.totalorder 2, %s9
      // Predicated region
      $region75: #{cfg_masked_denoiser_forward.1} parent=5 // pred_check
        %p268 = pneg %p267
      $region76: #{cfg_masked_denoiser_forward.1} parent=5 // pred_check_branch
        %270 = sbr.rel (%p268) target = $region78
      $region77: #{cfg_masked_denoiser_forward.1} parent=5 // pred_region
        %s271 = ssub.s32 %s9, 2
        // Predicated region
        $region79: #{cfg_masked_denoiser_forward.1} parent=77 // pred_check
          %p272 = pneg %p116
        $region80: #{cfg_masked_denoiser_forward.1} parent=77 // pred_check_branch
          %274 = sbr.rel (%p272) target = $region82
        $region81: #{cfg_masked_denoiser_forward.1} parent=77 // pred_region
          %p275 = scmp.lt.s32.totalorder %s15, 1
          %s276 = scalar_select %p275, %s15, 1
          %s277 = smul.addr %s276, 8
          %s278 = scalar_lea.vmem %s3, %s277
        $region82: #{cfg_masked_denoiser_forward.1} parent=77 // pred_fallthru
          _
      $region78: #{cfg_masked_denoiser_forward.1} parent=5 // pred_fallthru
        _
    $region6: #{cfg_masked_denoiser_forward.1} parent=1 // loop_footer
      %s13 = sadd.s32 1, %s9
    $region7: #{cfg_masked_denoiser_forward.1} parent=1 // loop_footer_branch
      %8 = sbr.rel target = $region3
    $region8: #{cfg_masked_denoiser_forward.1} parent=1 // loop_exit
      _

</llo_original>
